<compile_context>
chip_gen: v5e
topology: v5e:2x2
jax: 0.10.0
libtpu: 0.0.40
codegen_flags: <defaults>
</compile_context>

<pallas_src>
import functools

import jax
import jax.numpy as jnp
from jax.experimental import pallas as pl
from jax.experimental.pallas import tpu as pltpu


_LANES = 128


def _round_up(a, b):
    return (a + b - 1) // b * b


def _round_down(a, b):
    return (a // b) * b


def _tpu_budget():
    """Returns (target tile bytes counted at f32 width, vmem_limit ceiling)."""
    try:
        cap = int(pltpu.get_tpu_info().vmem_capacity_bytes)
    except Exception:  # interpret mode / older jax -> conservative fallback
        cap = 64 << 20
    cap = max(32 << 20, min(cap, 256 << 20))
    # v5e/v6e: 128 MiB VMEM -> ~8 MiB tiles; v7x: 64 MiB/TC -> ~4 MiB tiles.
    tile = (8 << 20) if cap >= (128 << 20) else (4 << 20)
    ceiling = (cap * 3) // 4  # leave compiler/internal-scratch headroom
    return tile, ceiling


def _pow_clamped(xc, p_val, p_static):
    """xc ** p with xc >= eps > 0 guaranteed by caller."""
    if p_static is not None:
        acc = xc
        for _ in range(int(p_static) - 1):   # VPU multiplies, no EUP traffic
            acc = acc * xc
        return acc
    return jnp.exp(p_val * jnp.log(xc))      # EUP; valid since xc > 0


def _root(m, p_val, p_static):
    if p_static is not None:
        return jnp.exp(jnp.log(m) * (1.0 / float(p_static)))
    return jnp.exp(jnp.log(m) / p_val)


def _gem_rows_kernel(p_ref, x_ref, o_ref, *, eps, inv_hw, p_static):
    # p_ref: SMEM (1,1); x_ref: VMEM (tr, hw); o_ref: VMEM (tr, 1)
    p = p_ref[0, 0]
    x = x_ref[...].astype(jnp.float32)
    xc = jnp.maximum(x, eps)
    xp = _pow_clamped(xc, p, p_static)
    m = jnp.sum(xp, axis=-1, keepdims=True) * inv_hw     # XLU reduce
    o_ref[...] = _root(m, p, p_static).astype(o_ref.dtype)


def _gem_packed_kernel(p_ref, x_ref, o_ref, w_ref, *, eps, hw, p_static):
    # p_ref: SMEM (1,1); x_ref: VMEM (tg, k*hw); o_ref: VMEM (tg, k) lane-dense
    # w_ref: VMEM scratch (k*hw, k) holding the block-diagonal 1/hw averaging
    # matrix, built once on the first grid step (grid axis is "arbitrary", so
    # it is never split across TensorCores and program_id==0 always runs).
    @pl.when(pl.program_id(0) == 0)
    def _():
        khw, k = w_ref.shape
        r = jax.lax.broadcasted_iota(jnp.int32, (khw, k), 0)
        c = jax.lax.broadcasted_iota(jnp.int32, (khw, k), 1)
        lo = c * hw
        mask = (r >= lo) & (r < lo + hw)
        w_ref[...] = jnp.where(mask, jnp.float32(1.0 / hw), jnp.float32(0.0))

    p = p_ref[0, 0]
    x = x_ref[...].astype(jnp.float32)
    xc = jnp.maximum(x, eps)
    xp = _pow_clamped(xc, p, p_static)
    # Segmented per-row mean via the otherwise-idle MXU (block-diag 1/hw).
    m = jnp.dot(xp, w_ref[...], preferred_element_type=jnp.float32)
    o_ref[...] = _root(m, p, p_static).astype(o_ref.dtype)


def gem_pallas(x, p, eps=1e-6, p_static=None):
    """GeM pooling.  x: (N, C, H, W).  p: scalar (trainable exponent, must be
    positive).  p_static: optional Python int; if given, the power uses VPU
    multiplies instead of EUP exp/log (use when p is not trainable)."""
    N, C, H, W = x.shape
    rows = N * C
    hw = H * W
    itemsize = jnp.dtype(x.dtype).itemsize
    x2 = x.reshape(rows, hw)
    p_arr = jnp.asarray(p, jnp.float32).reshape(1, 1)
    tile_bytes, vmem_ceiling = _tpu_budget()

    if hw < _LANES:
        # ---------- packed path: 128 rows per lane-dense block row ----------
        k = _LANES
        khw = k * hw
        rows_p = _round_up(rows, k)
        if rows_p != rows:
            # Pad only to a multiple of 128 (needed for the (g, k*hw) view);
            # zero padding is safe: clamp maps it to eps>0 and the wrapper
            # discards those rows.  No-op when C is a multiple of 128.
            # TODO(synk): for huge rows with rows%128 != 0 this is still a
            # full copy; the <=127 tail rows could be routed via the rows path.
            x2 = jnp.pad(x2, ((0, rows_p - rows), (0, 0)))
        g = rows_p // k
        xg = x2.reshape(g, khw)

        tg = max(1, tile_bytes // (khw * 4))
        if g <= tg:
            tg = g                         # block == full extent (allowed)
        else:
            tg = max(8, _round_down(tg, 8))
        grid = pl.cdiv(g, tg)              # ragged last block OK

        vmem_est = (2 * tg * khw * itemsize    # double-buffered input tile
                    + khw * k * 4              # resident averaging scratch
                    + 3 * tg * khw * 4         # f32 intermediates headroom
                    + 2 * tg * k * itemsize)   # output tile
        vmem_limit = int(min(vmem_ceiling, max(32 << 20, vmem_est)))

        trans = (0 if p_static is not None else 2 * g * khw) + 2 * g * k
        cost = pl.CostEstimate(
            flops=int(3 * g * khw + 2 * g * khw * k),
            transcendentals=int(trans),
            bytes_accessed=int(g * khw * itemsize + g * k * itemsize))

        out = pl.pallas_call(
            functools.partial(_gem_packed_kernel, eps=eps, hw=hw,
                              p_static=p_static),
            out_shape=jax.ShapeDtypeStruct((g, k), x.dtype),
            grid=(grid,),
            in_specs=[
                pl.BlockSpec(memory_space=pltpu.MemorySpace.SMEM),  # p scalar
                pl.BlockSpec((tg, khw), lambda i: (i, 0)),          # packed x
            ],
            out_specs=pl.BlockSpec((tg, k), lambda i: (i, 0)),      # lane-dense
            scratch_shapes=[pltpu.VMEM((khw, k), jnp.float32)],
            compiler_params=pltpu.CompilerParams(
                dimension_semantics=("arbitrary",),   # scratch init at pid==0
                vmem_limit_bytes=vmem_limit),
            cost_estimate=cost,
        )(p_arr, xg)
        pooled = out.reshape(rows_p)[:rows]
    else:
        # ---------- rows path: per-row reduce over full spatial extent -------
        # No wrapper-side padding: grid = cdiv(rows, tr) with a ragged last
        # block; OOB garbage only lands in rows that are never read back.
        tr = max(8, _round_down(tile_bytes // (hw * 4), 8))
        tr = min(tr, _round_up(rows, 8))
        grid = pl.cdiv(rows, tr)

        vmem_est = 2 * tr * hw * itemsize + 3 * tr * hw * 4 + 2 * tr * 4
        vmem_limit = int(min(vmem_ceiling, max(32 << 20, vmem_est)))

        trans = (0 if p_static is not None else 2 * rows * hw) + 2 * rows
        cost = pl.CostEstimate(
            flops=int(3 * rows * hw),
            transcendentals=int(trans),
            bytes_accessed=int(rows * hw * itemsize + rows * itemsize))

        out = pl.pallas_call(
            functools.partial(_gem_rows_kernel, eps=eps,
                              inv_hw=1.0 / float(hw), p_static=p_static),
            out_shape=jax.ShapeDtypeStruct((rows, 1), x.dtype),
            grid=(grid,),
            in_specs=[
                pl.BlockSpec(memory_space=pltpu.MemorySpace.SMEM),  # p scalar
                pl.BlockSpec((tr, hw), lambda i: (i, 0)),           # x tile
            ],
            out_specs=pl.BlockSpec((tr, 1), lambda i: (i, 0)),
            compiler_params=pltpu.CompilerParams(
                dimension_semantics=("parallel",),
                vmem_limit_bytes=vmem_limit),
            cost_estimate=cost,
        )(p_arr, x2)
        pooled = out.reshape(rows)

    return pooled.reshape(N, C, 1, 1)


def gem_reference(x, p, eps=1e-6):
    """Pure-JAX reference matching F.avg_pool2d(clamp(x,eps)**p, (H,W))**(1/p)."""
    xc = jnp.maximum(x, eps) ** p
    m = jnp.mean(xc, axis=(-2, -1), keepdims=True)
    return m ** (1.0 / p)


if __name__ == "__main__":
    # Deterministic parameter init matching GeM.__init__(p=3, p_trainable=True):
    # self.p = Parameter(torch.ones(1) * 3)
    p_param = jnp.ones((1,), jnp.float32) * 3.0
    eps = 1e-6

    k0, k1, k2 = jax.random.split(jax.random.PRNGKey(0), 3)

    # Case 1: hw >= 128 -> rows path, general trainable-p formulation.
    x1 = jax.random.uniform(k0, (2, 4, 16, 16), dtype=jnp.float32)  # NCHW
    out1 = jax.block_until_ready(gem_pallas(x1, p_param[0], eps=eps))
    ref1 = gem_reference(x1, p_param[0], eps=eps)
    assert out1.shape == (2, 4, 1, 1), out1.shape
    assert jnp.allclose(out1, ref1, rtol=2e-5, atol=2e-6), (
        float(jnp.max(jnp.abs(out1 - ref1))))

    # Case 2: rows not a multiple of 8 -> exercises the ragged last block
    # in the rows path (no wrapper pad).
    x2_ = jax.random.uniform(k2, (3, 5, 16, 16), dtype=jnp.float32)
    out2 = jax.block_until_ready(gem_pallas(x2_, p_param[0], eps=eps))
    ref2 = gem_reference(x2_, p_param[0], eps=eps)
    assert out2.shape == (3, 5, 1, 1), out2.shape
    assert jnp.allclose(out2, ref2, rtol=2e-5, atol=2e-6), (
        float(jnp.max(jnp.abs(out2 - ref2))))

    # Case 3: ResNet-style 7x7 spatial (hw < 128 -> packed MXU path),
    # static integer-p fast path.
    x3 = jax.random.uniform(k1, (2, 8, 7, 7), dtype=jnp.float32)
    out3 = jax.block_until_ready(gem_pallas(x3, 3.0, eps=eps, p_static=3))
    ref3 = gem_reference(x3, 3.0, eps=eps)
    assert out3.shape == (2, 8, 1, 1), out3.shape
    assert jnp.allclose(out3, ref3, rtol=2e-5, atol=2e-6), (
        float(jnp.max(jnp.abs(out3 - ref3))))

    # Case 4: packed path with the general (trainable) p formulation.
    x4 = jax.random.uniform(k1, (2, 4, 7, 7), dtype=jnp.float32)
    out4 = jax.block_until_ready(gem_pallas(x4, p_param[0], eps=eps))
    ref4 = gem_reference(x4, p_param[0], eps=eps)
    assert out4.shape == (2, 4, 1, 1), out4.shape
    assert jnp.allclose(out4, ref4, rtol=2e-5, atol=2e-6), (
        float(jnp.max(jnp.abs(out4 - ref4))))

    print("KERNEL_OK")
</pallas_src>

<mosaic_0001>
module attributes {stable_mosaic.version = 11 : i64} {
  func.func @_gem_rows_kernel(%arg0: i32, %arg1: memref<1x1xf32, #tpu.memory_space<smem>>, %arg2: memref<8x256xf32, #tpu.memory_space<vmem>>, %arg3: memref<8x1xf32, #tpu.memory_space<vmem>>) attributes {dimension_semantics = [#tpu.dimension_semantics<parallel>], iteration_bounds = array<i64: 1>, scalar_prefetch = 0 : i64, scratch_operands = 0 : i64, tpu.core_type = #tpu.core_type<tc>, window_params = [{transform_indices = @transform_0, window_bounds = array<i64: 1, 1>}, {transform_indices = @transform_1, window_bounds = array<i64: 8, 256>}, {transform_indices = @transform_2, window_bounds = array<i64: 8, 1>}]} {
    %c0 = arith.constant 0 : index
    %c0_0 = arith.constant 0 : index
    %0 = memref.load %arg1[%c0, %c0_0] : memref<1x1xf32, #tpu.memory_space<smem>>
    %c0_1 = arith.constant 0 : index
    %c0_2 = arith.constant 0 : index
    %1 = vector.load %arg2[%c0_1, %c0_2] : memref<8x256xf32, #tpu.memory_space<vmem>>, vector<8x256xf32>
    %cst = arith.constant 9.99999997E-7 : f32
    %2 = vector.broadcast %cst : f32 to vector<8x256xf32>
    %3 = arith.maximumf %1, %2 : vector<8x256xf32>
    %4 = math.log %3 : vector<8x256xf32>
    %5 = vector.broadcast %0 : f32 to vector<8x256xf32>
    %6 = arith.mulf %5, %4 : vector<8x256xf32>
    %7 = math.exp %6 : vector<8x256xf32>
    %cst_3 = arith.constant dense<0.000000e+00> : vector<8xf32>
    %8 = vector.multi_reduction <add>, %7, %cst_3 [1] : vector<8x256xf32> to vector<8xf32>
    %9 = vector.shape_cast %8 : vector<8xf32> to vector<8x1xf32>
    %cst_4 = arith.constant 3.906250e-03 : f32
    %10 = vector.broadcast %cst_4 : f32 to vector<8x1xf32>
    %11 = arith.mulf %9, %10 : vector<8x1xf32>
    %12 = math.log %11 : vector<8x1xf32>
    %13 = vector.broadcast %0 : f32 to vector<8x1xf32>
    %14 = arith.divf %12, %13 : vector<8x1xf32>
    %15 = math.exp %14 : vector<8x1xf32>
    %c0_5 = arith.constant 0 : index
    %c0_6 = arith.constant 0 : index
    %16 = vector.load %arg3[%c0_5, %c0_6] : memref<8x1xf32, #tpu.memory_space<vmem>>, vector<8x1xf32>
    tpu.vector_store %arg3[%c0_5, %c0_6], %15 {strides = array<i32>} : memref<8x1xf32, #tpu.memory_space<vmem>>, vector<8x1xf32>,
    return
  }
  func.func @transform_0(%arg0: i32) -> (i32, i32) {
    %c0_i32 = arith.constant 0 : i32
    %c0_i32_0 = arith.constant 0 : i32
    %c0_i32_1 = arith.constant 0 : i32
    return %c0_i32, %c0_i32_0 : i32, i32
  }
  func.func @transform_1(%arg0: i32) -> (i32, i32) {
    %c0_i32 = arith.constant 0 : i32
    %c0_i32_0 = arith.constant 0 : i32
    return %arg0, %c0_i32 : i32, i32
  }
  func.func @transform_2(%arg0: i32) -> (i32, i32) {
    %c0_i32 = arith.constant 0 : i32
    %c0_i32_0 = arith.constant 0 : i32
    return %arg0, %c0_i32 : i32, i32
  }
}

</mosaic_0001>

<llo_original>
// kernel: tpu_custom_call.1
$region0: #{tpu_custom_call.1}
  #allocation0 [shape = 'u32[]', space=smem, size = 0x4, offset = 0x4, fixed_abs, tag = 'smem constant byte address 0x4 - core index']
  #allocation1 [shape = 'u32[72,128]{1,0:T(1,128)}', space=vmem, size = 0x9000, scoped, tag = 'internal scratch']
  #allocation2 [shape = 'f32[1,1]{1,0:T(1,128)S(6)}', space=smem, size = 0x200, scoped, tag = 'scoped memory for tpu_custom_call.1']
  %s0 = inlined_call_operand.<no memory space> [shape: f32[1,1], index: 0, kind: input, shape index: {}]
  %s1 = inlined_call_operand.hbm [shape: f32[8,256], index: 1, kind: input, shape index: {}]
  %s2 = inlined_call_operand.vmem [shape: f32[8,1], index: 2, kind: output, shape index: {}]
  %s3 = sld [smem:[#allocation0]]
  $region22: #{tpu_custom_call.1} parent=0
    _
  %s5 = ssub.s32 1, %s3
  %s6 = scalar_select 0, %s5, %s3
  %7 = sst [smem:[#allocation2]] %s0
  $region1: #{tpu_custom_call.1} parent=0
    #allocation3 [shape = 'u8[8192]{0}', space=vmem, size = 0x2000, scoped, tag = 'input window, operand 1, single buffered']
    #allocation4 [shape = 's32[1]{0}', space=sflag, size = 0x4, scoped, tag = 'scoped memory for tpu_custom_call.1']
    %8 = vsyncpa [#allocation4], 0
    // Predicated region
    $region2: #{tpu_custom_call.1} parent=1 // pred_check
      _
    $region3: #{tpu_custom_call.1} parent=1 // pred_check_branch
      %10 = sbr.rel (0) target = $region5
    $region4: #{tpu_custom_call.1} parent=1 // pred_region
      _
    $region5: #{tpu_custom_call.1} parent=1 // pred_fallthru
      _
    // Predicated region
    $region6: #{tpu_custom_call.1} parent=1 // pred_check
      _
    $region7: #{tpu_custom_call.1} parent=1 // pred_check_branch
      %12 = sbr.rel (0) target = $region9
    $region8: #{tpu_custom_call.1} parent=1 // pred_region
      %14 = vsyncadd [#allocation4], 0
      %s16 = sshll.u32 %s1, 4
      %s17 = int_to_ptr.hbm [resolvable:$true] %s16
      %s18 = sshll.u32 [#allocation3], 4
      %s19 = int_to_ptr.vmem [resolvable:$true] %s18
      %21 = dma.hbm_to_vmem [thread:$0]  %s17, 256, %s19, [#allocation4]
    $region9: #{tpu_custom_call.1} parent=1 // pred_fallthru
      _
    // Predicated region
    $region10: #{tpu_custom_call.1} parent=1 // pred_check
      _
    $region11: #{tpu_custom_call.1} parent=1 // pred_check_branch
      %23 = sbr.rel (0) target = $region13
    $region12: #{tpu_custom_call.1} parent=1 // pred_region
      %25 = dma.done [#allocation4], 256
    $region13: #{tpu_custom_call.1} parent=1 // pred_fallthru
      _
    %s26 = sld [smem:[#allocation2]]
    %v27 = vld [vmem:[#allocation3] sm:$0xff]
    %v28 = vld [vmem:[#allocation3 + $0x8] sm:$0xff]
    %v29 = vmax.f32 %v27, 1e-06
    %v30 = vmax.f32 %v28, 1e-06
    %v31 = vlog2.pop %v29
    %v32 = vmul.f32 %v31, 0.6931472
    %v33 = vlog2.pop %v30
    %v34 = vmul.f32 %v33, 0.6931472
    %v35 = vstv %s26
    %v36 = vmul.f32 %v35, %v32
    %v37 = vmul.f32 %v35, %v34
    %v38 = vmul.f32 %v36, 1.442695
    %v39 = vpow.pop %v38
    %v40 = vmul.f32 %v37, 1.442695
    %v41 = vpow.pop %v40
    %v42 = vadd.f32 %v39, %v41
    %43 = vadd.xlane.f32.xlu0 %v42
    %v44 = vpop.xlane.xlu0 %43
    %v45 = vmul.f32 %v44, 0.00390625
    %v46 = vlog2.pop %v45
    %v47 = vmul.f32 %v46, 0.6931472
    %v48 = vrcp.pop %v35
    %v49 = vmul.f32 %v35, %v48
    %v50 = vsub.f32 1.0, %v49
    %v51 = vmul.f32 %v48, %v50
    %v52 = vadd.f32 %v48, %v51
    %vm53 = vweird.f32 %v35
    %vm54 = vweird.f32 %v48
    %vm55 = vmor %vm53, %vm54
    %v56 = vsel %vm55, %v48, %v52
    %v57 = vand.u32 2147483647, %v35
    %vm58 = vcmp.eq.f32.partialorder %v57, 8.507059e+37
    %v59 = vand.u32 %v35, 2147483648
    %v60 = vor.u32 1.1754944e-38, %v59
    %v61 = vsel %vm58, %v60, %v56
    %v62 = vmul.f32 %v47, %v61
    %v63 = vmul.f32 %v62, 1.442695
    %v64 = vpow.pop %v63
    %vm65 = vcmask 7168
    %66 = vst.msk [vmem:[%s2] sm:$0xff] %vm65, %v64
    // Predicated region
    $region14: #{tpu_custom_call.1} parent=1 // pred_check
      _
    $region15: #{tpu_custom_call.1} parent=1 // pred_check_branch
      %68 = sbr.rel (0) target = $region17
    $region16: #{tpu_custom_call.1} parent=1 // pred_region
      _
    $region17: #{tpu_custom_call.1} parent=1 // pred_fallthru
      _
    // Predicated region
    $region18: #{tpu_custom_call.1} parent=1 // pred_check
      _
    $region19: #{tpu_custom_call.1} parent=1 // pred_check_branch
      %70 = sbr.rel (0) target = $region21
    $region20: #{tpu_custom_call.1} parent=1 // pred_region
      _
    $region21: #{tpu_custom_call.1} parent=1 // pred_fallthru
      _
    %71 = vsyncpa [#allocation4], 1

</llo_original>
